<compile_context>
chip_gen: v7x
topology: tpu7x:2x2x1
jax: 0.10.0
libtpu: 0.0.40
codegen_flags: <defaults>
</compile_context>

<pallas_src>
import functools

import jax
import jax.numpy as jnp
from jax.experimental import pallas as pl
from jax.experimental.pallas import tpu as pltpu

# ---------------------------------------------------------------------------
# Model dimensions
# ---------------------------------------------------------------------------
B, C, H, W = 2, 4, 16, 16          # NCHW input
K = C * H * W                      # flattened feature dim = 1024
D_EMB = 256                        # pretrained_model embedding width
D_HID = 128                        # additional_layers embedding width
N_CLS = 2                          # gender logits
N_CLS_PAD = 128                    # lane-dense padded head width
MAX_TB = 512                       # max batch tile (VMEM ~5 MiB, safe on all gens)
MIN_PAR_TB = 256                   # tile size used when splitting for 2 TCs (v7x)


def _round_up(x, m):
    return ((x + m - 1) // m) * m


# ---------------------------------------------------------------------------
# Fused forward kernel:  x -> relu(xW0+b0) -> relu(.W1+b1) -> .W2+b2
# x arrives f32 and is cast to bf16 in-kernel (fused cast); matmul operands
# are bf16, accumulation + bias add + ReLU stay f32 (v5e-friendly).
# Optional trailing output ref receives the additional-layer embeddings (bf16).
# ---------------------------------------------------------------------------
def finetune_kernel(x_ref, w0_ref, b0_ref, w1_ref, b1_ref, w2_ref, b2_ref,
                    logits_ref, *emb_out):
    x = x_ref[...].astype(jnp.bfloat16)                        # (TB, K) fused f32->bf16 cast
    b0 = b0_ref[...]                                           # hoisted bias reads (f32)
    b1 = b1_ref[...]
    b2 = b2_ref[...]

    # pretrained_model: Linear + ReLU
    h0 = jnp.dot(x, w0_ref[...], preferred_element_type=jnp.float32)
    h0 = jnp.maximum(h0 + b0, 0.0)                             # (TB, D_EMB) f32

    # additional_layers: Linear + ReLU  -> "embeddings"
    h1 = jnp.dot(h0.astype(jnp.bfloat16), w1_ref[...],
                 preferred_element_type=jnp.float32)
    h1 = jnp.maximum(h1 + b1, 0.0)                             # (TB, D_HID) f32
    if emb_out:                                                # static (trace-time) branch
        emb_out[0][...] = h1.astype(jnp.bfloat16)              # bf16 store, f32 kept below

    # final_layer: Linear (padded to 128 output lanes, lane-dense store)
    h2 = jnp.dot(h1.astype(jnp.bfloat16), w2_ref[...],
                 preferred_element_type=jnp.float32)
    logits_ref[...] = h2 + b2                                  # (TB, N_CLS_PAD) f32


@functools.partial(jax.jit, static_argnames=("get_embeddings_additional_layer",))
def finetune_forward(x_nchw, params, get_embeddings_additional_layer=False):
    """Runs the fused FineTuneModel forward pass on TPU via Pallas."""
    w0, b0, w1, b1, w2p, b2p = params
    b = x_nchw.shape[0]

    # Glue: flatten NCHW (kept f32 -- the bf16 cast is fused into the kernel),
    # pad the batch to a 16-row multiple (bf16 sublane packing) and to the tile.
    x_flat = x_nchw.reshape(b, -1)                             # (B, K) f32
    pb16 = _round_up(b, 16)
    tb = min(MAX_TB, pb16)
    # v7x megacore: ensure >= 2 "parallel" grid steps when the batch allows it.
    if pb16 >= 2 * MIN_PAR_TB and pb16 // tb < 2:
        tb = MIN_PAR_TB
    pb = _round_up(pb16, tb)
    x_flat = jnp.pad(x_flat, ((0, pb - b), (0, 0)))

    grid = (pb // tb,)
    # Grid-invariant operands: single-buffer them (constant index_map => one DMA).
    single_buf = dict(pipeline_mode=pl.Buffered(1))
    in_specs = [
        pl.BlockSpec((tb, K), lambda i: (i, 0)),                              # x tile (f32)
        pl.BlockSpec((K, D_EMB), lambda i: (0, 0), **single_buf),             # W0 (bf16)
        pl.BlockSpec((1, D_EMB), lambda i: (0, 0), **single_buf),             # b0 (f32)
        pl.BlockSpec((D_EMB, D_HID), lambda i: (0, 0), **single_buf),         # W1 (bf16)
        pl.BlockSpec((1, D_HID), lambda i: (0, 0), **single_buf),             # b1 (f32)
        pl.BlockSpec((D_HID, N_CLS_PAD), lambda i: (0, 0), **single_buf),     # W2 (bf16, padded)
        pl.BlockSpec((1, N_CLS_PAD), lambda i: (0, 0), **single_buf),         # b2 (f32, padded)
    ]

    logits_shape = jax.ShapeDtypeStruct((pb, N_CLS_PAD), jnp.float32)
    logits_spec = pl.BlockSpec((tb, N_CLS_PAD), lambda i: (i, 0))
    if get_embeddings_additional_layer:
        out_shape = (logits_shape, jax.ShapeDtypeStruct((pb, D_HID), jnp.bfloat16))
        out_specs = (logits_spec, pl.BlockSpec((tb, D_HID), lambda i: (i, 0)))
    else:
        out_shape = logits_shape
        out_specs = logits_spec

    # Advisory scheduling hint for XLA.
    flops = 2 * pb * (K * D_EMB + D_EMB * D_HID + D_HID * N_CLS_PAD)
    out_bytes = pb * N_CLS_PAD * 4
    if get_embeddings_additional_layer:
        out_bytes += pb * D_HID * 2                            # bf16 embeddings
    bytes_accessed = (
        x_flat.size * 4                                        # f32 x read
        + (w0.size + w1.size + w2p.size) * 2                   # bf16 weights
        + (b0.size + b1.size + b2p.size) * 4                   # f32 biases
        + out_bytes
    )

    result = pl.pallas_call(
        finetune_kernel,
        out_shape=out_shape,
        grid_spec=pltpu.PrefetchScalarGridSpec(
            num_scalar_prefetch=0,
            grid=grid,
            in_specs=in_specs,
            out_specs=out_specs,
        ),
        compiler_params=pltpu.CompilerParams(
            dimension_semantics=("parallel",),   # batch tiles shard across TCs on v7x
        ),
        cost_estimate=pl.CostEstimate(
            flops=flops, transcendentals=0, bytes_accessed=bytes_accessed),
    )(x_flat, w0, b0, w1, b1, w2p, b2p)

    if get_embeddings_additional_layer:
        logits_pad, emb_pad = result
        return logits_pad[:b, :N_CLS], emb_pad[:b, :]
    return result[:b, :N_CLS]


# ---------------------------------------------------------------------------
# Deterministic parameter init + pure-JAX reference (same bf16 matmul inputs,
# f32 accumulation) for sanity checking
# ---------------------------------------------------------------------------
def init_params(key):
    k0, k1, k2, k3, k4, k5 = jax.random.split(key, 6)
    w0 = (jax.random.normal(k0, (K, D_EMB), jnp.float32) * 0.02).astype(jnp.bfloat16)
    b0 = jax.random.normal(k1, (1, D_EMB), jnp.float32) * 0.02
    w1 = (jax.random.normal(k2, (D_EMB, D_HID), jnp.float32) * 0.02).astype(jnp.bfloat16)
    b1 = jax.random.normal(k3, (1, D_HID), jnp.float32) * 0.02
    w2 = (jax.random.normal(k4, (D_HID, N_CLS), jnp.float32) * 0.02).astype(jnp.bfloat16)
    b2 = jax.random.normal(k5, (1, N_CLS), jnp.float32) * 0.02
    # Pad the classifier head to a lane-dense width (zeros beyond class 2).
    w2p = jnp.zeros((D_HID, N_CLS_PAD), jnp.bfloat16).at[:, :N_CLS].set(w2)
    b2p = jnp.zeros((1, N_CLS_PAD), jnp.float32).at[:, :N_CLS].set(b2)
    return (w0, b0, w1, b1, w2p, b2p)


def reference_forward(x_nchw, params):
    w0, b0, w1, b1, w2p, b2p = params
    x = x_nchw.reshape(x_nchw.shape[0], -1).astype(jnp.bfloat16)
    h0 = jnp.maximum(
        jnp.dot(x, w0, preferred_element_type=jnp.float32) + b0, 0.0)
    h1 = jnp.maximum(
        jnp.dot(h0.astype(jnp.bfloat16), w1, preferred_element_type=jnp.float32) + b1, 0.0)
    logits = (jnp.dot(h1.astype(jnp.bfloat16), w2p,
                      preferred_element_type=jnp.float32) + b2p)[:, :N_CLS]
    return logits, h1


if __name__ == "__main__":
    key = jax.random.PRNGKey(0)
    kx, kp = jax.random.split(key)
    x = jax.random.normal(kx, (B, C, H, W), jnp.float32)   # NCHW input
    params = init_params(kp)

    # Variant with embeddings (get_embeddings_additional_layer=True).
    logits, embeddings = finetune_forward(
        x, params, get_embeddings_additional_layer=True)
    # Logits-only variant (no embeddings writeback).
    logits_only = finetune_forward(x, params, get_embeddings_additional_layer=False)
    jax.block_until_ready((logits, embeddings, logits_only))

    ref_logits, ref_emb = reference_forward(x, params)
    assert logits.shape == (B, N_CLS)
    assert embeddings.shape == (B, D_HID)
    assert logits_only.shape == (B, N_CLS)
    assert jnp.allclose(logits, ref_logits, atol=2e-3, rtol=2e-3)
    assert jnp.allclose(logits_only, ref_logits, atol=2e-3, rtol=2e-3)
    # Embeddings are stored bf16 by the kernel; compare in f32 with bf16 tolerance.
    assert jnp.allclose(embeddings.astype(jnp.float32), ref_emb, atol=1e-2, rtol=1e-2)

    print("KERNEL_OK")
</pallas_src>

<mosaic_0001>
module attributes {stable_mosaic.version = 11 : i64} {
  func.func @finetune_kernel(%arg0: i32, %arg1: memref<16x1024xf32, #tpu.memory_space<vmem>>, %arg2: memref<1024x256xbf16, #tpu.memory_space<vmem>>, %arg3: memref<1x256xf32, #tpu.memory_space<vmem>>, %arg4: memref<256x128xbf16, #tpu.memory_space<vmem>>, %arg5: memref<1x128xf32, #tpu.memory_space<vmem>>, %arg6: memref<128x128xbf16, #tpu.memory_space<vmem>>, %arg7: memref<1x128xf32, #tpu.memory_space<vmem>>, %arg8: memref<16x128xf32, #tpu.memory_space<vmem>>, %arg9: memref<16x128xbf16, #tpu.memory_space<vmem>>) attributes {dimension_semantics = [#tpu.dimension_semantics<parallel>], iteration_bounds = array<i64: 1>, scalar_prefetch = 0 : i64, scratch_operands = 0 : i64, tpu.core_type = #tpu.core_type<tc>, window_params = [{transform_indices = @transform_0, window_bounds = array<i64: 16, 1024>}, {pipeline_mode = #tpu.pipeline_mode<synchronous>, transform_indices = @transform_1, window_bounds = array<i64: 1024, 256>}, {pipeline_mode = #tpu.pipeline_mode<synchronous>, transform_indices = @transform_2, window_bounds = array<i64: 1, 256>}, {pipeline_mode = #tpu.pipeline_mode<synchronous>, transform_indices = @transform_3, window_bounds = array<i64: 256, 128>}, {pipeline_mode = #tpu.pipeline_mode<synchronous>, transform_indices = @transform_4, window_bounds = array<i64: 1, 128>}, {pipeline_mode = #tpu.pipeline_mode<synchronous>, transform_indices = @transform_5, window_bounds = array<i64: 128, 128>}, {pipeline_mode = #tpu.pipeline_mode<synchronous>, transform_indices = @transform_6, window_bounds = array<i64: 1, 128>}, {transform_indices = @transform_7, window_bounds = array<i64: 16, 128>}, {transform_indices = @transform_8, window_bounds = array<i64: 16, 128>}]} {
    %c0 = arith.constant 0 : index
    %c0_0 = arith.constant 0 : index
    %0 = vector.load %arg1[%c0, %c0_0] : memref<16x1024xf32, #tpu.memory_space<vmem>>, vector<16x1024xf32>
    %1 = arith.truncf %0 : vector<16x1024xf32> to vector<16x1024xbf16>
    %c0_1 = arith.constant 0 : index
    %c0_2 = arith.constant 0 : index
    %2 = vector.load %arg3[%c0_1, %c0_2] : memref<1x256xf32, #tpu.memory_space<vmem>>, vector<1x256xf32>
    %c0_3 = arith.constant 0 : index
    %c0_4 = arith.constant 0 : index
    %3 = vector.load %arg5[%c0_3, %c0_4] : memref<1x128xf32, #tpu.memory_space<vmem>>, vector<1x128xf32>
    %c0_5 = arith.constant 0 : index
    %c0_6 = arith.constant 0 : index
    %4 = vector.load %arg7[%c0_5, %c0_6] : memref<1x128xf32, #tpu.memory_space<vmem>>, vector<1x128xf32>
    %c0_7 = arith.constant 0 : index
    %c0_8 = arith.constant 0 : index
    %5 = vector.load %arg2[%c0_7, %c0_8] : memref<1024x256xbf16, #tpu.memory_space<vmem>>, vector<1024x256xbf16>
    %cst = arith.constant dense<0.000000e+00> : vector<16x256xf32>
    %6 = tpu.matmul %1, %5, %cst {dimension_numbers = #tpu.dot_dimension_numbers<[1], [0], [0], [1], [0, 0, 1, 1], [], []>} : vector<16x1024xbf16>, vector<1024x256xbf16>, vector<16x256xf32> -> vector<16x256xf32>
    %7 = vector.broadcast %2 : vector<1x256xf32> to vector<16x256xf32>
    %8 = arith.addf %6, %7 : vector<16x256xf32>
    %cst_9 = arith.constant 0.000000e+00 : f32
    %9 = vector.broadcast %cst_9 : f32 to vector<16x256xf32>
    %10 = arith.maximumf %8, %9 : vector<16x256xf32>
    %11 = arith.truncf %10 : vector<16x256xf32> to vector<16x256xbf16>
    %c0_10 = arith.constant 0 : index
    %c0_11 = arith.constant 0 : index
    %12 = vector.load %arg4[%c0_10, %c0_11] : memref<256x128xbf16, #tpu.memory_space<vmem>>, vector<256x128xbf16>
    %cst_12 = arith.constant dense<0.000000e+00> : vector<16x128xf32>
    %13 = tpu.matmul %11, %12, %cst_12 {dimension_numbers = #tpu.dot_dimension_numbers<[1], [0], [0], [1], [0, 0, 1, 1], [], []>} : vector<16x256xbf16>, vector<256x128xbf16>, vector<16x128xf32> -> vector<16x128xf32>
    %14 = vector.broadcast %3 : vector<1x128xf32> to vector<16x128xf32>
    %15 = arith.addf %13, %14 : vector<16x128xf32>
    %cst_13 = arith.constant 0.000000e+00 : f32
    %16 = vector.broadcast %cst_13 : f32 to vector<16x128xf32>
    %17 = arith.maximumf %15, %16 : vector<16x128xf32>
    %18 = arith.truncf %17 : vector<16x128xf32> to vector<16x128xbf16>
    %c0_14 = arith.constant 0 : index
    %c0_15 = arith.constant 0 : index
    %19 = vector.load %arg9[%c0_14, %c0_15] : memref<16x128xbf16, #tpu.memory_space<vmem>>, vector<16x128xbf16>
    tpu.vector_store %arg9[%c0_14, %c0_15], %18 {strides = array<i32>} : memref<16x128xbf16, #tpu.memory_space<vmem>>, vector<16x128xbf16>,
    %20 = arith.truncf %17 : vector<16x128xf32> to vector<16x128xbf16>
    %c0_16 = arith.constant 0 : index
    %c0_17 = arith.constant 0 : index
    %21 = vector.load %arg6[%c0_16, %c0_17] : memref<128x128xbf16, #tpu.memory_space<vmem>>, vector<128x128xbf16>
    %cst_18 = arith.constant dense<0.000000e+00> : vector<16x128xf32>
    %22 = tpu.matmul %20, %21, %cst_18 {dimension_numbers = #tpu.dot_dimension_numbers<[1], [0], [0], [1], [0, 0, 1, 1], [], []>} : vector<16x128xbf16>, vector<128x128xbf16>, vector<16x128xf32> -> vector<16x128xf32>
    %23 = vector.broadcast %4 : vector<1x128xf32> to vector<16x128xf32>
    %24 = arith.addf %22, %23 : vector<16x128xf32>
    %c0_19 = arith.constant 0 : index
    %c0_20 = arith.constant 0 : index
    %25 = vector.load %arg8[%c0_19, %c0_20] : memref<16x128xf32, #tpu.memory_space<vmem>>, vector<16x128xf32>
    tpu.vector_store %arg8[%c0_19, %c0_20], %24 {strides = array<i32>} : memref<16x128xf32, #tpu.memory_space<vmem>>, vector<16x128xf32>,
    return
  }
  func.func @transform_0(%arg0: i32) -> (i32, i32) {
    %c0_i32 = arith.constant 0 : i32
    %c0_i32_0 = arith.constant 0 : i32
    return %arg0, %c0_i32 : i32, i32
  }
  func.func @transform_1(%arg0: i32) -> (i32, i32) {
    %c0_i32 = arith.constant 0 : i32
    %c0_i32_0 = arith.constant 0 : i32
    %c0_i32_1 = arith.constant 0 : i32
    return %c0_i32, %c0_i32_0 : i32, i32
  }
  func.func @transform_2(%arg0: i32) -> (i32, i32) {
    %c0_i32 = arith.constant 0 : i32
    %c0_i32_0 = arith.constant 0 : i32
    %c0_i32_1 = arith.constant 0 : i32
    return %c0_i32, %c0_i32_0 : i32, i32
  }
  func.func @transform_3(%arg0: i32) -> (i32, i32) {
    %c0_i32 = arith.constant 0 : i32
    %c0_i32_0 = arith.constant 0 : i32
    %c0_i32_1 = arith.constant 0 : i32
    return %c0_i32, %c0_i32_0 : i32, i32
  }
  func.func @transform_4(%arg0: i32) -> (i32, i32) {
    %c0_i32 = arith.constant 0 : i32
    %c0_i32_0 = arith.constant 0 : i32
    %c0_i32_1 = arith.constant 0 : i32
    return %c0_i32, %c0_i32_0 : i32, i32
  }
  func.func @transform_5(%arg0: i32) -> (i32, i32) {
    %c0_i32 = arith.constant 0 : i32
    %c0_i32_0 = arith.constant 0 : i32
    %c0_i32_1 = arith.constant 0 : i32
    return %c0_i32, %c0_i32_0 : i32, i32
  }
  func.func @transform_6(%arg0: i32) -> (i32, i32) {
    %c0_i32 = arith.constant 0 : i32
    %c0_i32_0 = arith.constant 0 : i32
    %c0_i32_1 = arith.constant 0 : i32
    return %c0_i32, %c0_i32_0 : i32, i32
  }
  func.func @transform_7(%arg0: i32) -> (i32, i32) {
    %c0_i32 = arith.constant 0 : i32
    %c0_i32_0 = arith.constant 0 : i32
    return %arg0, %c0_i32 : i32, i32
  }
  func.func @transform_8(%arg0: i32) -> (i32, i32) {
    %c0_i32 = arith.constant 0 : i32
    %c0_i32_0 = arith.constant 0 : i32
    return %arg0, %c0_i32 : i32, i32
  }
}

</mosaic_0001>

<llo_original>
// kernel: finetune_forward.1
$region0: #{finetune_forward.1}
  #allocation0 [shape = 'u32[]', space=smem, size = 0x4, offset = 0x4, fixed_abs, tag = 'smem constant byte address 0x4 - core index']
  #allocation1 [shape = 'u32[144,128]{1,0:T(1,128)}', space=vmem, size = 0x12000, scoped, tag = 'internal scratch']
  %s0 = inlined_call_operand.vmem [shape: f32[16,1024], index: 0, kind: input, shape index: {}]
  %s1 = inlined_call_operand.hbm [shape: bf16[1024,256], index: 1, kind: input, shape index: {}]
  %s2 = inlined_call_operand.vmem [shape: f32[1,256], index: 2, kind: input, shape index: {}]
  %s3 = inlined_call_operand.vmem [shape: bf16[256,128], index: 3, kind: input, shape index: {}]
  %s4 = inlined_call_operand.vmem [shape: f32[1,128], index: 4, kind: input, shape index: {}]
  %s5 = inlined_call_operand.vmem [shape: bf16[128,128], index: 5, kind: input, shape index: {}]
  %s6 = inlined_call_operand.vmem [shape: f32[1,128], index: 6, kind: input, shape index: {}]
  %s7 = inlined_call_operand.vmem [shape: f32[16,128], index: 7, kind: output, shape index: {0}]
  %s8 = inlined_call_operand.vmem [shape: bf16[16,128], index: 8, kind: output, shape index: {1}]
  %9 = xla_tuple %s7, %s8
  %s10 = sld [smem:[#allocation0]]
  $region50: #{finetune_forward.1} parent=0
    _
  %s12 = ssub.s32 1, %s10
  %s13 = scalar_select 0, %s12, %s10
  $region1: #{finetune_forward.1} parent=0
    #allocation2 [shape = 'u8[524288]{0}', space=vmem, size = 0x80000, scoped, tag = 'input window, operand 1, single buffered']
    #allocation3 [shape = 's32[1]{0}', space=sflag, size = 0x4, scoped, tag = 'scoped memory for finetune_forward.1']
    %14 = vsyncpa [#allocation3], 0
    // Predicated region
    $region2: #{finetune_forward.1} parent=1 // pred_check
      _
    $region3: #{finetune_forward.1} parent=1 // pred_check_branch
      %16 = sbr.rel (0) target = $region5
    $region4: #{finetune_forward.1} parent=1 // pred_region
      _
    $region5: #{finetune_forward.1} parent=1 // pred_fallthru
      _
    // Predicated region
    $region6: #{finetune_forward.1} parent=1 // pred_check
      _
    $region7: #{finetune_forward.1} parent=1 // pred_check_branch
      %18 = sbr.rel (0) target = $region9
    $region8: #{finetune_forward.1} parent=1 // pred_region
      %s20 = ssub.s32 16384, 16384
      %21 = vsyncadd [#allocation3], %s20
      %s22 = sshll.u32 [#allocation2], 4
      %s23 = int_to_ptr.vmem [resolvable:$true] %s22
      %28 = dma.hbm_to_vmem [thread:$0]  %s1, 16384, %s23, [#allocation3], 128, 128, 8
    $region9: #{finetune_forward.1} parent=1 // pred_fallthru
      _
    // Predicated region
    $region10: #{finetune_forward.1} parent=1 // pred_check
      _
    $region11: #{finetune_forward.1} parent=1 // pred_check_branch
      %30 = sbr.rel (0) target = $region13
    $region12: #{finetune_forward.1} parent=1 // pred_region
      _
    $region13: #{finetune_forward.1} parent=1 // pred_fallthru
      _
    // Predicated region
    $region14: #{finetune_forward.1} parent=1 // pred_check
      _
    $region15: #{finetune_forward.1} parent=1 // pred_check_branch
      %32 = sbr.rel (0) target = $region17
    $region16: #{finetune_forward.1} parent=1 // pred_region
      _
    $region17: #{finetune_forward.1} parent=1 // pred_fallthru
      _
    // Predicated region
    $region18: #{finetune_forward.1} parent=1 // pred_check
      _
    $region19: #{finetune_forward.1} parent=1 // pred_check_branch
      %34 = sbr.rel (0) target = $region21
    $region20: #{finetune_forward.1} parent=1 // pred_region
      _
    $region21: #{finetune_forward.1} parent=1 // pred_fallthru
      _
    // Predicated region
    $region22: #{finetune_forward.1} parent=1 // pred_check
      _
    $region23: #{finetune_forward.1} parent=1 // pred_check_branch
      %36 = sbr.rel (0) target = $region25
    $region24: #{finetune_forward.1} parent=1 // pred_region
      _
    $region25: #{finetune_forward.1} parent=1 // pred_fallthru
      _
    // Predicated region
    $region26: #{finetune_forward.1} parent=1 // pred_check
      _
    $region27: #{finetune_forward.1} parent=1 // pred_check_branch
      %38 = sbr.rel (0) target = $region29
    $region28: #{finetune_forward.1} parent=1 // pred_region
      _
    $region29: #{finetune_forward.1} parent=1 // pred_fallthru
      _
    // Predicated region
    $region30: #{finetune_forward.1} parent=1 // pred_check
      _
    $region31: #{finetune_forward.1} parent=1 // pred_check_branch
      %40 = sbr.rel (0) target = $region33
    $region32: #{finetune_forward.1} parent=1 // pred_region
      %41 = dma.done [#allocation3], 16384
    $region33: #{finetune_forward.1} parent=1 // pred_fallthru
      _
    %v43 = vld [vmem:[%s0] sm:$0xff]
    %v44 = vld [vmem:[%s0 + $0x8] sm:$0xff]
    %v45 = vld [vmem:[%s0 + $0x10] sm:$0xff]
    %v46 = vld [vmem:[%s0 + $0x18] sm:$0xff]
    %v47 = vld [vmem:[%s0 + $0x20] sm:$0xff]
    %v48 = vld [vmem:[%s0 + $0x28] sm:$0xff]
    %v49 = vld [vmem:[%s0 + $0x30] sm:$0xff]
    %v50 = vld [vmem:[%s0 + $0x38] sm:$0xff]
    %v51 = vld [vmem:[%s0 + $0x40] sm:$0xff]
    %v52 = vld [vmem:[%s0 + $0x48] sm:$0xff]
    %v53 = vld [vmem:[%s0 + $0x50] sm:$0xff]
    %v54 = vld [vmem:[%s0 + $0x58] sm:$0xff]
    %v55 = vld [vmem:[%s0 + $0x60] sm:$0xff]
    %v56 = vld [vmem:[%s0 + $0x68] sm:$0xff]
    %v57 = vld [vmem:[%s0 + $0x70] sm:$0xff]
    %v58 = vld [vmem:[%s0 + $0x78] sm:$0xff]
    %v59 = vpack.c.bf16 %v51, %v43
    %v60 = vpack.c.bf16 %v52, %v44
    %v61 = vpack.c.bf16 %v53, %v45
    %v62 = vpack.c.bf16 %v54, %v46
    %v63 = vpack.c.bf16 %v55, %v47
    %v64 = vpack.c.bf16 %v56, %v48
    %v65 = vpack.c.bf16 %v57, %v49
    %v66 = vpack.c.bf16 %v58, %v50
    %v67 = vld [vmem:[%s2] sm:$0x3]
    %v68 = vld [vmem:[%s4] sm:$0x1]
    %v69 = vld [vmem:[%s6] sm:$0x1]
    %v70 = vld [vmem:[#allocation2] sm:$0xff]
    %v71 = vld [vmem:[#allocation2 + $0x8] sm:$0xff]
    %v72 = vld [vmem:[#allocation2 + $0x10] sm:$0xff]
    %v73 = vld [vmem:[#allocation2 + $0x18] sm:$0xff]
    %v74 = vld [vmem:[#allocation2 + $0x20] sm:$0xff]
    %v75 = vld [vmem:[#allocation2 + $0x28] sm:$0xff]
    %v76 = vld [vmem:[#allocation2 + $0x30] sm:$0xff]
    %v77 = vld [vmem:[#allocation2 + $0x38] sm:$0xff]
    %v78 = vld [vmem:[#allocation2 + $0x40] sm:$0xff]
    %v79 = vld [vmem:[#allocation2 + $0x48] sm:$0xff]
    %v80 = vld [vmem:[#allocation2 + $0x50] sm:$0xff]
    %v81 = vld [vmem:[#allocation2 + $0x58] sm:$0xff]
    %v82 = vld [vmem:[#allocation2 + $0x60] sm:$0xff]
    %v83 = vld [vmem:[#allocation2 + $0x68] sm:$0xff]
    %v84 = vld [vmem:[#allocation2 + $0x70] sm:$0xff]
    %v85 = vld [vmem:[#allocation2 + $0x78] sm:$0xff]
    %v86 = vld [vmem:[#allocation2 + $0x80] sm:$0xff]
    %v87 = vld [vmem:[#allocation2 + $0x88] sm:$0xff]
    %v88 = vld [vmem:[#allocation2 + $0x90] sm:$0xff]
    %v89 = vld [vmem:[#allocation2 + $0x98] sm:$0xff]
    %v90 = vld [vmem:[#allocation2 + $0xa0] sm:$0xff]
    %v91 = vld [vmem:[#allocation2 + $0xa8] sm:$0xff]
    %v92 = vld [vmem:[#allocation2 + $0xb0] sm:$0xff]
    %v93 = vld [vmem:[#allocation2 + $0xb8] sm:$0xff]
    %v94 = vld [vmem:[#allocation2 + $0xc0] sm:$0xff]
    %v95 = vld [vmem:[#allocation2 + $0xc8] sm:$0xff]
    %v96 = vld [vmem:[#allocation2 + $0xd0] sm:$0xff]
    %v97 = vld [vmem:[#allocation2 + $0xd8] sm:$0xff]
    %v98 = vld [vmem:[#allocation2 + $0xe0] sm:$0xff]
    %v99 = vld [vmem:[#allocation2 + $0xe8] sm:$0xff]
    %v100 = vld [vmem:[#allocation2 + $0xf0] sm:$0xff]
    %v101 = vld [vmem:[#allocation2 + $0xf8] sm:$0xff]
    %v102 = vld [vmem:[#allocation2 + $0x100] sm:$0xff]
    %v103 = vld [vmem:[#allocation2 + $0x108] sm:$0xff]
    %v104 = vld [vmem:[#allocation2 + $0x110] sm:$0xff]
    %v105 = vld [vmem:[#allocation2 + $0x118] sm:$0xff]
    %v106 = vld [vmem:[#allocation2 + $0x120] sm:$0xff]
    %v107 = vld [vmem:[#allocation2 + $0x128] sm:$0xff]
    %v108 = vld [vmem:[#allocation2 + $0x130] sm:$0xff]
    %v109 = vld [vmem:[#allocation2 + $0x138] sm:$0xff]
    %v110 = vld [vmem:[#allocation2 + $0x140] sm:$0xff]
    %v111 = vld [vmem:[#allocation2 + $0x148] sm:$0xff]
    %v112 = vld [vmem:[#allocation2 + $0x150] sm:$0xff]
    %v113 = vld [vmem:[#allocation2 + $0x158] sm:$0xff]
    %v114 = vld [vmem:[#allocation2 + $0x160] sm:$0xff]
    %v115 = vld [vmem:[#allocation2 + $0x168] sm:$0xff]
    %v116 = vld [vmem:[#allocation2 + $0x170] sm:$0xff]
    %v117 = vld [vmem:[#allocation2 + $0x178] sm:$0xff]
    %v118 = vld [vmem:[#allocation2 + $0x180] sm:$0xff]
    %v119 = vld [vmem:[#allocation2 + $0x188] sm:$0xff]
    %v120 = vld [vmem:[#allocation2 + $0x190] sm:$0xff]
    %v121 = vld [vmem:[#allocation2 + $0x198] sm:$0xff]
    %v122 = vld [vmem:[#allocation2 + $0x1a0] sm:$0xff]
    %v123 = vld [vmem:[#allocation2 + $0x1a8] sm:$0xff]
    %v124 = vld [vmem:[#allocation2 + $0x1b0] sm:$0xff]
    %v125 = vld [vmem:[#allocation2 + $0x1b8] sm:$0xff]
    %v126 = vld [vmem:[#allocation2 + $0x1c0] sm:$0xff]
    %v127 = vld [vmem:[#allocation2 + $0x1c8] sm:$0xff]
    %v128 = vld [vmem:[#allocation2 + $0x1d0] sm:$0xff]
    %v129 = vld [vmem:[#allocation2 + $0x1d8] sm:$0xff]
    %v130 = vld [vmem:[#allocation2 + $0x1e0] sm:$0xff]
    %v131 = vld [vmem:[#allocation2 + $0x1e8] sm:$0xff]
    %v132 = vld [vmem:[#allocation2 + $0x1f0] sm:$0xff]
    %v133 = vld [vmem:[#allocation2 + $0x1f8] sm:$0xff]
    %v134 = vld [vmem:[#allocation2 + $0x200] sm:$0xff]
    %v135 = vld [vmem:[#allocation2 + $0x208] sm:$0xff]
    %v136 = vld [vmem:[#allocation2 + $0x210] sm:$0xff]
    %v137 = vld [vmem:[#allocation2 + $0x218] sm:$0xff]
    %v138 = vld [vmem:[#allocation2 + $0x220] sm:$0xff]
    %v139 = vld [vmem:[#allocation2 + $0x228] sm:$0xff]
    %v140 = vld [vmem:[#allocation2 + $0x230] sm:$0xff]
    %v141 = vld [vmem:[#allocation2 + $0x238] sm:$0xff]
    %v142 = vld [vmem:[#allocation2 + $0x240] sm:$0xff]
    %v143 = vld [vmem:[#allocation2 + $0x248] sm:$0xff]
    %v144 = vld [vmem:[#allocation2 + $0x250] sm:$0xff]
    %v145 = vld [vmem:[#allocation2 + $0x258] sm:$0xff]
    %v146 = vld [vmem:[#allocation2 + $0x260] sm:$0xff]
    %v147 = vld [vmem:[#allocation2 + $0x268] sm:$0xff]
    %v148 = vld [vmem:[#allocation2 + $0x270] sm:$0xff]
    %v149 = vld [vmem:[#allocation2 + $0x278] sm:$0xff]
    %v150 = vld [vmem:[#allocation2 + $0x280] sm:$0xff]
    %v151 = vld [vmem:[#allocation2 + $0x288] sm:$0xff]
    %v152 = vld [vmem:[#allocation2 + $0x290] sm:$0xff]
    %v153 = vld [vmem:[#allocation2 + $0x298] sm:$0xff]
    %v154 = vld [vmem:[#allocation2 + $0x2a0] sm:$0xff]
    %v155 = vld [vmem:[#allocation2 + $0x2a8] sm:$0xff]
    %v156 = vld [vmem:[#allocation2 + $0x2b0] sm:$0xff]
    %v157 = vld [vmem:[#allocation2 + $0x2b8] sm:$0xff]
    %v158 = vld [vmem:[#allocation2 + $0x2c0] sm:$0xff]
    %v159 = vld [vmem:[#allocation2 + $0x2c8] sm:$0xff]
    %v160 = vld [vmem:[#allocation2 + $0x2d0] sm:$0xff]
    %v161 = vld [vmem:[#allocation2 + $0x2d8] sm:$0xff]
    %v162 = vld [vmem:[#allocation2 + $0x2e0] sm:$0xff]
    %v163 = vld [vmem:[#allocation2 + $0x2e8] sm:$0xff]
    %v164 = vld [vmem:[#allocation2 + $0x2f0] sm:$0xff]
    %v165 = vld [vmem:[#allocation2 + $0x2f8] sm:$0xff]
    %v166 = vld [vmem:[#allocation2 + $0x300] sm:$0xff]
    %v167 = vld [vmem:[#allocation2 + $0x308] sm:$0xff]
    %v168 = vld [vmem:[#allocation2 + $0x310] sm:$0xff]
    %v169 = vld [vmem:[#allocation2 + $0x318] sm:$0xff]
    %v170 = vld [vmem:[#allocation2 + $0x320] sm:$0xff]
    %v171 = vld [vmem:[#allocation2 + $0x328] sm:$0xff]
    %v172 = vld [vmem:[#allocation2 + $0x330] sm:$0xff]
    %v173 = vld [vmem:[#allocation2 + $0x338] sm:$0xff]
    %v174 = vld [vmem:[#allocation2 + $0x340] sm:$0xff]
    %v175 = vld [vmem:[#allocation2 + $0x348] sm:$0xff]
    %v176 = vld [vmem:[#allocation2 + $0x350] sm:$0xff]
    %v177 = vld [vmem:[#allocation2 + $0x358] sm:$0xff]
    %v178 = vld [vmem:[#allocation2 + $0x360] sm:$0xff]
    %v179 = vld [vmem:[#allocation2 + $0x368] sm:$0xff]
    %v180 = vld [vmem:[#allocation2 + $0x370] sm:$0xff]
    %v181 = vld [vmem:[#allocation2 + $0x378] sm:$0xff]
    %v182 = vld [vmem:[#allocation2 + $0x380] sm:$0xff]
    %v183 = vld [vmem:[#allocation2 + $0x388] sm:$0xff]
    %v184 = vld [vmem:[#allocation2 + $0x390] sm:$0xff]
    %v185 = vld [vmem:[#allocation2 + $0x398] sm:$0xff]
    %v186 = vld [vmem:[#allocation2 + $0x3a0] sm:$0xff]
    %v187 = vld [vmem:[#allocation2 + $0x3a8] sm:$0xff]
    %v188 = vld [vmem:[#allocation2 + $0x3b0] sm:$0xff]
    %v189 = vld [vmem:[#allocation2 + $0x3b8] sm:$0xff]
    %v190 = vld [vmem:[#allocation2 + $0x3c0] sm:$0xff]
    %v191 = vld [vmem:[#allocation2 + $0x3c8] sm:$0xff]
    %v192 = vld [vmem:[#allocation2 + $0x3d0] sm:$0xff]
    %v193 = vld [vmem:[#allocation2 + $0x3d8] sm:$0xff]
    %v194 = vld [vmem:[#allocation2 + $0x3e0] sm:$0xff]
    %v195 = vld [vmem:[#allocation2 + $0x3e8] sm:$0xff]
    %v196 = vld [vmem:[#allocation2 + $0x3f0] sm:$0xff]
    %v197 = vld [vmem:[#allocation2 + $0x3f8] sm:$0xff]
    %v199 = vlaneseq
    %v200 = vshrl.u32 %v199, 7
    %v201 = vsub.s32 0, %v200
    %v202 = vrot.slane %v67, %v201
    %v203 = vlaneseq
    %v204 = vshrl.u32 %v203, 7
    %v205 = vsub.s32 1, %v204
    %v206 = vrot.slane %v67, %v205
    %v337 = vunpack.c.l.b16 %v70
    %v338 = vunpack.c.h.b16 %v70
    %v339 = vunpack.c.l.b16 %v71
    %v340 = vunpack.c.h.b16 %v71
    %v341 = vunpack.c.l.b16 %v72
    %v342 = vunpack.c.h.b16 %v72
    %v343 = vunpack.c.l.b16 %v73
    %v344 = vunpack.c.h.b16 %v73
    %v345 = vunpack.c.l.b16 %v74
    %v346 = vunpack.c.h.b16 %v74
    %v347 = vunpack.c.l.b16 %v75
    %v348 = vunpack.c.h.b16 %v75
    %v349 = vunpack.c.l.b16 %v76
    %v350 = vunpack.c.h.b16 %v76
    %v351 = vunpack.c.l.b16 %v77
    %v352 = vunpack.c.h.b16 %v77
    %v353 = vunpack.c.l.b16 %v78
    %v354 = vunpack.c.h.b16 %v78
    %v355 = vunpack.c.l.b16 %v79
    %v356 = vunpack.c.h.b16 %v79
    %v357 = vunpack.c.l.b16 %v80
    %v358 = vunpack.c.h.b16 %v80
    %v359 = vunpack.c.l.b16 %v81
    %v360 = vunpack.c.h.b16 %v81
    %v361 = vunpack.c.l.b16 %v82
    %v362 = vunpack.c.h.b16 %v82
    %v363 = vunpack.c.l.b16 %v83
    %v364 = vunpack.c.h.b16 %v83
    %v365 = vunpack.c.l.b16 %v84
    %v366 = vunpack.c.h.b16 %v84
    %v367 = vunpack.c.l.b16 %v85
    %v368 = vunpack.c.h.b16 %v85
    %v369 = vunpack.c.l.b16 %v86
    %v370 = vunpack.c.h.b16 %v86
    %v371 = vunpack.c.l.b16 %v87
    %v372 = vunpack.c.h.b16 %v87
    %v373 = vunpack.c.l.b16 %v88
    %v374 = vunpack.c.h.b16 %v88
    %v375 = vunpack.c.l.b16 %v89
    %v376 = vunpack.c.h.b16 %v89
    %v377 = vunpack.c.l.b16 %v90
    %v378 = vunpack.c.h.b16 %v90
    %v379 = vunpack.c.l.b16 %v91
    %v380 = vunpack.c.h.b16 %v91
    %v381 = vunpack.c.l.b16 %v92
    %v382 = vunpack.c.h.b16 %v92
    %v383 = vunpack.c.l.b16 %v93
    %v384 = vunpack.c.h.b16 %v93
    %v385 = vunpack.c.l.b16 %v94
    %v386 = vunpack.c.h.b16 %v94
    %v387 = vunpack.c.l.b16 %v95
    %v388 = vunpack.c.h.b16 %v95
    %v389 = vunpack.c.l.b16 %v96
    %v390 = vunpack.c.h.b16 %v96
    %v391 = vunpack.c.l.b16 %v97
    %v392 = vunpack.c.h.b16 %v97
    %v393 = vunpack.c.l.b16 %v98
    %v394 = vunpack.c.h.b16 %v98
    %v395 = vunpack.c.l.b16 %v99
    %v396 = vunpack.c.h.b16 %v99
    %v397 = vunpack.c.l.b16 %v100
    %v398 = vunpack.c.h.b16 %v100
    %v399 = vunpack.c.l.b16 %v101
    %v400 = vunpack.c.h.b16 %v101
    %v401 = vunpack.c.l.b16 %v102
    %v402 = vunpack.c.h.b16 %v102
    %v403 = vunpack.c.l.b16 %v103
    %v404 = vunpack.c.h.b16 %v103
    %v405 = vunpack.c.l.b16 %v104
    %v406 = vunpack.c.h.b16 %v104
    %v407 = vunpack.c.l.b16 %v105
    %v408 = vunpack.c.h.b16 %v105
    %v409 = vunpack.c.l.b16 %v106
    %v410 = vunpack.c.h.b16 %v106
    %v411 = vunpack.c.l.b16 %v107
    %v412 = vunpack.c.h.b16 %v107
    %v413 = vunpack.c.l.b16 %v108
    %v414 = vunpack.c.h.b16 %v108
    %v415 = vunpack.c.l.b16 %v109
    %v416 = vunpack.c.h.b16 %v109
    %v417 = vunpack.c.l.b16 %v110
    %v418 = vunpack.c.h.b16 %v110
    %v419 = vunpack.c.l.b16 %v111
    %v420 = vunpack.c.h.b16 %v111
    %v421 = vunpack.c.l.b16 %v112
    %v422 = vunpack.c.h.b16 %v112
    %v423 = vunpack.c.l.b16 %v113
    %v424 = vunpack.c.h.b16 %v113
    %v425 = vunpack.c.l.b16 %v114
    %v426 = vunpack.c.h.b16 %v114
    %v427 = vunpack.c.l.b16 %v115
    %v428 = vunpack.c.h.b16 %v115
    %v429 = vunpack.c.l.b16 %v116
    %v430 = vunpack.c.h.b16 %v116
    %v431 = vunpack.c.l.b16 %v117
    %v432 = vunpack.c.h.b16 %v117
    %v433 = vunpack.c.l.b16 %v118
    %v434 = vunpack.c.h.b16 %v118
    %v435 = vunpack.c.l.b16 %v119
    %v436 = vunpack.c.h.b16 %v119
    %v437 = vunpack.c.l.b16 %v120
    %v438 = vunpack.c.h.b16 %v120
    %v439 = vunpack.c.l.b16 %v121
    %v440 = vunpack.c.h.b16 %v121
    %v441 = vunpack.c.l.b16 %v122
    %v442 = vunpack.c.h.b16 %v122
    %v443 = vunpack.c.l.b16 %v123
    %v444 = vunpack.c.h.b16 %v123
    %v445 = vunpack.c.l.b16 %v124
    %v446 = vunpack.c.h.b16 %v124
    %v447 = vunpack.c.l.b16 %v125
    %v448 = vunpack.c.h.b16 %v125
    %v449 = vunpack.c.l.b16 %v126
    %v450 = vunpack.c.h.b16 %v126
    %v451 = vunpack.c.l.b16 %v127
    %v452 = vunpack.c.h.b16 %v127
    %v453 = vunpack.c.l.b16 %v128
    %v454 = vunpack.c.h.b16 %v128
    %v455 = vunpack.c.l.b16 %v129
    %v456 = vunpack.c.h.b16 %v129
    %v457 = vunpack.c.l.b16 %v130
    %v458 = vunpack.c.h.b16 %v130
    %v459 = vunpack.c.l.b16 %v131
    %v460 = vunpack.c.h.b16 %v131
    %v461 = vunpack.c.l.b16 %v132
    %v462 = vunpack.c.h.b16 %v132
    %v463 = vunpack.c.l.b16 %v133
    %v464 = vunpack.c.h.b16 %v133
    %v465 = vunpack.c.l.b16 %v134
    %v466 = vunpack.c.h.b16 %v134
    %v467 = vunpack.c.l.b16 %v135
    %v468 = vunpack.c.h.b16 %v135
    %v469 = vunpack.c.l.b16 %v136
    %v470 = vunpack.c.h.b16 %v136
    %v471 = vunpack.c.l.b16 %v137
    %v472 = vunpack.c.h.b16 %v137
    %v473 = vunpack.c.l.b16 %v138
    %v474 = vunpack.c.h.b16 %v138
    %v475 = vunpack.c.l.b16 %v139
    %v476 = vunpack.c.h.b16 %v139
    %v477 = vunpack.c.l.b16 %v140
    %v478 = vunpack.c.h.b16 %v140
    %v479 = vunpack.c.l.b16 %v141
    %v480 = vunpack.c.h.b16 %v141
    %v481 = vunpack.c.l.b16 %v142
    %v482 = vunpack.c.h.b16 %v142
    %v483 = vunpack.c.l.b16 %v143
    %v484 = vunpack.c.h.b16 %v143
    %v485 = vunpack.c.l.b16 %v144
    %v486 = vunpack.c.h.b16 %v144
    %v487 = vunpack.c.l.b16 %v145
    %v488 = vunpack.c.h.b16 %v145
    %v489 = vunpack.c.l.b16 %v146
    %v490 = vunpack.c.h.b16 %v146
    %v491 = vunpack.c.l.b16 %v147
    %v492 = vunpack.c.h.b16 %v147
    %v493 = vunpack.c.l.b16 %v148
    %v494 = vunpack.c.h.b16 %v148
    %v495 = vunpack.c.l.b16 %v149
    %v496 = vunpack.c.h.b16 %v149
    %v497 = vunpack.c.l.b16 %v150
    %v498 = vunpack.c.h.b16 %v150
    %v499 = vunpack.c.l.b16 %v151
    %v500 = vunpack.c.h.b16 %v151
    %v501 = vunpack.c.l.b16 %v152
    %v502 = vunpack.c.h.b16 %v152
    %v503 = vunpack.c.l.b16 %v153
    %v504 = vunpack.c.h.b16 %v153
    %v505 = vunpack.c.l.b16 %v154
    %v506 = vunpack.c.h.b16 %v154
    %v507 = vunpack.c.l.b16 %v155
    %v508 = vunpack.c.h.b16 %v155
    %v509 = vunpack.c.l.b16 %v156
    %v510 = vunpack.c.h.b16 %v156
    %v511 = vunpack.c.l.b16 %v157
    %v512 = vunpack.c.h.b16 %v157
    %v513 = vunpack.c.l.b16 %v158
    %v514 = vunpack.c.h.b16 %v158
    %v515 = vunpack.c.l.b16 %v159
    %v516 = vunpack.c.h.b16 %v159
    %v517 = vunpack.c.l.b16 %v160
    %v518 = vunpack.c.h.b16 %v160
    %v519 = vunpack.c.l.b16 %v161
    %v520 = vunpack.c.h.b16 %v161
    %v521 = vunpack.c.l.b16 %v162
    %v522 = vunpack.c.h.b16 %v162
    %v523 = vunpack.c.l.b16 %v163
    %v524 = vunpack.c.h.b16 %v163
    %v525 = vunpack.c.l.b16 %v164
    %v526 = vunpack.c.h.b16 %v164
    %v527 = vunpack.c.l.b16 %v165
    %v528 = vunpack.c.h.b16 %v165
    %v529 = vunpack.c.l.b16 %v166
    %v530 = vunpack.c.h.b16 %v166
    %v531 = vunpack.c.l.b16 %v167
    %v532 = vunpack.c.h.b16 %v167
    %v533 = vunpack.c.l.b16 %v168
    %v534 = vunpack.c.h.b16 %v168
    %v535 = vunpack.c.l.b16 %v169
    %v536 = vunpack.c.h.b16 %v169
    %v537 = vunpack.c.l.b16 %v170
    %v538 = vunpack.c.h.b16 %v170
    %v539 = vunpack.c.l.b16 %v171
    %v540 = vunpack.c.h.b16 %v171
    %v541 = vunpack.c.l.b16 %v172
    %v542 = vunpack.c.h.b16 %v172
    %v543 = vunpack.c.l.b16 %v173
    %v544 = vunpack.c.h.b16 %v173
    %v545 = vunpack.c.l.b16 %v174
    %v546 = vunpack.c.h.b16 %v174
    %v547 = vunpack.c.l.b16 %v175
    %v548 = vunpack.c.h.b16 %v175
    %v549 = vunpack.c.l.b16 %v176
    %v550 = vunpack.c.h.b16 %v176
    %v551 = vunpack.c.l.b16 %v177
    %v552 = vunpack.c.h.b16 %v177
    %v553 = vunpack.c.l.b16 %v178
    %v554 = vunpack.c.h.b16 %v178
    %v555 = vunpack.c.l.b16 %v179
    %v556 = vunpack.c.h.b16 %v179
    %v557 = vunpack.c.l.b16 %v180
    %v558 = vunpack.c.h.b16 %v180
    %v559 = vunpack.c.l.b16 %v181
    %v560 = vunpack.c.h.b16 %v181
    %v561 = vunpack.c.l.b16 %v182
    %v562 = vunpack.c.h.b16 %v182
    %v563 = vunpack.c.l.b16 %v183
    %v564 = vunpack.c.h.b16 %v183
    %v565 = vunpack.c.l.b16 %v184
    %v566 = vunpack.c.h.b16 %v184
    %v567 = vunpack.c.l.b16 %v185
    %v568 = vunpack.c.h.b16 %v185
    %v569 = vunpack.c.l.b16 %v186
    %v570 = vunpack.c.h.b16 %v186
    %v571 = vunpack.c.l.b16 %v187
    %v572 = vunpack.c.h.b16 %v187
    %v573 = vunpack.c.l.b16 %v188
    %v574 = vunpack.c.h.b16 %v188
    %v575 = vunpack.c.l.b16 %v189
    %v576 = vunpack.c.h.b16 %v189
    %v577 = vunpack.c.l.b16 %v190
    %v578 = vunpack.c.h.b16 %v190
    %v579 = vunpack.c.l.b16 %v191
    %v580 = vunpack.c.h.b16 %v191
    %v581 = vunpack.c.l.b16 %v192
    %v582 = vunpack.c.h.b16 %v192
    %v583 = vunpack.c.l.b16 %v193
    %v584 = vunpack.c.h.b16 %v193
    %v585 = vunpack.c.l.b16 %v194
    %v586 = vunpack.c.h.b16 %v194
    %v587 = vunpack.c.l.b16 %v195
    %v588 = vunpack.c.h.b16 %v195
    %v589 = vunpack.c.l.b16 %v196
    %v590 = vunpack.c.h.b16 %v196
    %v591 = vunpack.c.l.b16 %v197
    %v592 = vunpack.c.h.b16 %v197
    %v593 = vpack.c.b16 %v339, %v337
    %v594 = vpack.c.b16 %v340, %v338
    %v595 = vpack.c.b16 %v343, %v341
    %v596 = vpack.c.b16 %v344, %v342
    %v597 = vpack.c.b16 %v347, %v345
    %v598 = vpack.c.b16 %v348, %v346
    %v599 = vpack.c.b16 %v351, %v349
    %v600 = vpack.c.b16 %v352, %v350
    %v601 = vpack.c.b16 %v355, %v353
    %v602 = vpack.c.b16 %v356, %v354
    %v603 = vpack.c.b16 %v359, %v357
    %v604 = vpack.c.b16 %v360, %v358
    %v605 = vpack.c.b16 %v363, %v361
    %v606 = vpack.c.b16 %v364, %v362
    %v607 = vpack.c.b16 %v367, %v365
    %v608 = vpack.c.b16 %v368, %v366
    %v609 = vpack.c.b16 %v371, %v369
    %v610 = vpack.c.b16 %v372, %v370
    %v611 = vpack.c.b16 %v375, %v373
    %v612 = vpack.c.b16 %v376, %v374
    %v613 = vpack.c.b16 %v379, %v377
    %v614 = vpack.c.b16 %v380, %v378
    %v615 = vpack.c.b16 %v383, %v381
    %v616 = vpack.c.b16 %v384, %v382
    %v617 = vpack.c.b16 %v387, %v385
    %v618 = vpack.c.b16 %v388, %v386
    %v619 = vpack.c.b16 %v391, %v389
    %v620 = vpack.c.b16 %v392, %v390
    %v621 = vpack.c.b16 %v395, %v393
    %v622 = vpack.c.b16 %v396, %v394
    %v623 = vpack.c.b16 %v399, %v397
    %v624 = vpack.c.b16 %v400, %v398
    %v625 = vpack.c.b16 %v403, %v401
    %v626 = vpack.c.b16 %v404, %v402
    %v627 = vpack.c.b16 %v407, %v405
    %v628 = vpack.c.b16 %v408, %v406
    %v629 = vpack.c.b16 %v411, %v409
    %v630 = vpack.c.b16 %v412, %v410
    %v631 = vpack.c.b16 %v415, %v413
    %v632 = vpack.c.b16 %v416, %v414
    %v633 = vpack.c.b16 %v419, %v417
    %v634 = vpack.c.b16 %v420, %v418
    %v635 = vpack.c.b16 %v423, %v421
    %v636 = vpack.c.b16 %v424, %v422
    %v637 = vpack.c.b16 %v427, %v425
    %v638 = vpack.c.b16 %v428, %v426
    %v639 = vpack.c.b16 %v431, %v429
    %v640 = vpack.c.b16 %v432, %v430
    %v641 = vpack.c.b16 %v435, %v433
    %v642 = vpack.c.b16 %v436, %v434
    %v643 = vpack.c.b16 %v439, %v437
    %v644 = vpack.c.b16 %v440, %v438
    %v645 = vpack.c.b16 %v443, %v441
    %v646 = vpack.c.b16 %v444, %v442
    %v647 = vpack.c.b16 %v447, %v445
    %v648 = vpack.c.b16 %v448, %v446
    %v649 = vpack.c.b16 %v451, %v449
    %v650 = vpack.c.b16 %v452, %v450
    %v651 = vpack.c.b16 %v455, %v453
    %v652 = vpack.c.b16 %v456, %v454
    %v653 = vpack.c.b16 %v459, %v457
    %v654 = vpack.c.b16 %v460, %v458
    %v655 = vpack.c.b16 %v463, %v461
    %v656 = vpack.c.b16 %v464, %v462
    %v657 = vpack.c.b16 %v467, %v465
    %v658 = vpack.c.b16 %v468, %v466
    %v659 = vpack.c.b16 %v471, %v469
    %v660 = vpack.c.b16 %v472, %v470
    %v661 = vpack.c.b16 %v475, %v473
    %v662 = vpack.c.b16 %v476, %v474
    %v663 = vpack.c.b16 %v479, %v477
    %v664 = vpack.c.b16 %v480, %v478
    %v665 = vpack.c.b16 %v483, %v481
    %v666 = vpack.c.b16 %v484, %v482
    %v667 = vpack.c.b16 %v487, %v485
    %v668 = vpack.c.b16 %v488, %v486
    %v669 = vpack.c.b16 %v491, %v489
    %v670 = vpack.c.b16 %v492, %v490
    %v671 = vpack.c.b16 %v495, %v493
    %v672 = vpack.c.b16 %v496, %v494
    %v673 = vpack.c.b16 %v499, %v497
    %v674 = vpack.c.b16 %v500, %v498
    %v675 = vpack.c.b16 %v503, %v501
    %v676 = vpack.c.b16 %v504, %v502
    %v677 = vpack.c.b16 %v507, %v505
    %v678 = vpack.c.b16 %v508, %v506
    %v679 = vpack.c.b16 %v511, %v509
    %v680 = vpack.c.b16 %v512, %v510
    %v681 = vpack.c.b16 %v515, %v513
    %v682 = vpack.c.b16 %v516, %v514
    %v683 = vpack.c.b16 %v519, %v517
    %v684 = vpack.c.b16 %v520, %v518
    %v685 = vpack.c.b16 %v523, %v521
    %v686 = vpack.c.b16 %v524, %v522
    %v687 = vpack.c.b16 %v527, %v525
    %v688 = vpack.c.b16 %v528, %v526
    %v689 = vpack.c.b16 %v531, %v529
    %v690 = vpack.c.b16 %v532, %v530
    %v691 = vpack.c.b16 %v535, %v533
    %v692 = vpack.c.b16 %v536, %v534
    %v693 = vpack.c.b16 %v539, %v537
    %v694 = vpack.c.b16 %v540, %v538
    %v695 = vpack.c.b16 %v543, %v541
    %v696 = vpack.c.b16 %v544, %v542
    %v697 = vpack.c.b16 %v547, %v545
    %v698 = vpack.c.b16 %v548, %v546
    %v699 = vpack.c.b16 %v551, %v549
    %v700 = vpack.c.b16 %v552, %v550
    %v701 = vpack.c.b16 %v555, %v553
    %v702 = vpack.c.b16 %v556, %v554
    %v703 = vpack.c.b16 %v559, %v557
    %v704 = vpack.c.b16 %v560, %v558
    %v705 = vpack.c.b16 %v563, %v561
    %v706 = vpack.c.b16 %v564, %v562
    %v707 = vpack.c.b16 %v567, %v565
    %v708 = vpack.c.b16 %v568, %v566
    %v709 = vpack.c.b16 %v571, %v569
    %v710 = vpack.c.b16 %v572, %v570
    %v711 = vpack.c.b16 %v575, %v573
    %v712 = vpack.c.b16 %v576, %v574
    %v713 = vpack.c.b16 %v579, %v577
    %v714 = vpack.c.b16 %v580, %v578
    %v715 = vpack.c.b16 %v583, %v581
    %v716 = vpack.c.b16 %v584, %v582
    %v717 = vpack.c.b16 %v587, %v585
    %v718 = vpack.c.b16 %v588, %v586
    %v719 = vpack.c.b16 %v591, %v589
    %v720 = vpack.c.b16 %v592, %v590
    %849 = vmatprep.subr.bf16.mxu0 %v594
    %850 = vmatpush1.bf16.msra.mxu0 %v593
    %851 = vmatprep.subr.bf16.mxu0 %v596
    %852 = vmatpush1.bf16.msra.mxu0 %v595
    %853 = vmatprep.subr.bf16.mxu0 %v598
    %854 = vmatpush1.bf16.msra.mxu0 %v597
    %855 = vmatprep.subr.bf16.mxu0 %v600
    %856 = vmatpush1.bf16.msra.mxu0 %v599
    %857 = vmatprep.subr.bf16.mxu0 %v602
    %858 = vmatpush1.bf16.msra.mxu0 %v601
    %859 = vmatprep.subr.bf16.mxu0 %v604
    %860 = vmatpush1.bf16.msra.mxu0 %v603
    %861 = vmatprep.subr.bf16.mxu0 %v606
    %862 = vmatpush1.bf16.msra.mxu0 %v605
    %863 = vmatprep.subr.bf16.mxu0 %v608
    %864 = vmatpush1.bf16.msra.mxu0 %v607
    %865 = vmatprep.subr.bf16.mxu0 %v610
    %866 = vmatpush1.bf16.msra.mxu0 %v609
    %867 = vmatprep.subr.bf16.mxu0 %v612
    %868 = vmatpush1.bf16.msra.mxu0 %v611
    %869 = vmatprep.subr.bf16.mxu0 %v614
    %870 = vmatpush1.bf16.msra.mxu0 %v613
    %871 = vmatprep.subr.bf16.mxu0 %v616
    %872 = vmatpush1.bf16.msra.mxu0 %v615
    %873 = vmatprep.subr.bf16.mxu0 %v618
    %874 = vmatpush1.bf16.msra.mxu0 %v617
    %875 = vmatprep.subr.bf16.mxu0 %v620
    %876 = vmatpush1.bf16.msra.mxu0 %v619
    %877 = vmatprep.subr.bf16.mxu0 %v622
    %878 = vmatpush1.bf16.msra.mxu0 %v621
    %879 = vmatprep.subr.bf16.mxu0 %v624
    %880 = vmatpush1.bf16.msra.mxu0 %v623
    %881 = vmatprep.mubr.bf16.mxu0 %v60
    %882 = vmatmul.mubr.bf16.gmra.mrb[0].mxu0 %v59
    %v883 = vpop.f32.mrb[0].mxu0
    %v884 = vadd.f32 %v202, %v883
    %v885 = vpop.f32.mrb[0].mxu0
    %v886 = vadd.f32 %v206, %v885
    %v887 = vpop.f32.mrb[0].mxu0
    %v888 = vadd.f32 %v202, %v887
    %v889 = vpop.f32.mrb[0].mxu0
    %v890 = vadd.f32 %v206, %v889
    %891 = vdwg.mxu0
    %892 = vmatprep.subr.bf16.mxu0 %v626
    %893 = vmatpush1.bf16.msra.mxu0 %v625
    %894 = vmatprep.subr.bf16.mxu0 %v628
    %895 = vmatpush1.bf16.msra.mxu0 %v627
    %896 = vmatprep.subr.bf16.mxu0 %v630
    %897 = vmatpush1.bf16.msra.mxu0 %v629
    %898 = vmatprep.subr.bf16.mxu0 %v632
    %899 = vmatpush1.bf16.msra.mxu0 %v631
    %900 = vmatprep.subr.bf16.mxu0 %v634
    %901 = vmatpush1.bf16.msra.mxu0 %v633
    %902 = vmatprep.subr.bf16.mxu0 %v636
    %903 = vmatpush1.bf16.msra.mxu0 %v635
    %904 = vmatprep.subr.bf16.mxu0 %v638
    %905 = vmatpush1.bf16.msra.mxu0 %v637
    %906 = vmatprep.subr.bf16.mxu0 %v640
    %907 = vmatpush1.bf16.msra.mxu0 %v639
    %908 = vmatprep.subr.bf16.mxu0 %v642
    %909 = vmatpush1.bf16.msra.mxu0 %v641
    %910 = vmatprep.subr.bf16.mxu0 %v644
    %911 = vmatpush1.bf16.msra.mxu0 %v643
    %912 = vmatprep.subr.bf16.mxu0 %v646
    %913 = vmatpush1.bf16.msra.mxu0 %v645
    %914 = vmatprep.subr.bf16.mxu0 %v648
    %915 = vmatpush1.bf16.msra.mxu0 %v647
    %916 = vmatprep.subr.bf16.mxu0 %v650
    %917 = vmatpush1.bf16.msra.mxu0 %v649
    %918 = vmatprep.subr.bf16.mxu0 %v652
    %919 = vmatpush1.bf16.msra.mxu0 %v651
    %920 = vmatprep.subr.bf16.mxu0 %v654
    %921 = vmatpush1.bf16.msra.mxu0 %v653
    %922 = vmatprep.subr.bf16.mxu0 %v656
    %923 = vmatpush1.bf16.msra.mxu0 %v655
    %924 = vmatprep.mubr.bf16.mxu0 %v62
    %925 = vmatmul.mubr.bf16.gmra.mrb[0].mxu0 %v61
    %v926 = vpop.f32.mrb[0].mxu0
    %v927 = vadd.f32 %v884, %v926
    %v928 = vpop.f32.mrb[0].mxu0
    %v929 = vadd.f32 %v886, %v928
    %v930 = vpop.f32.mrb[0].mxu0
    %v931 = vadd.f32 %v888, %v930
    %v932 = vpop.f32.mrb[0].mxu0
    %v933 = vadd.f32 %v890, %v932
    %934 = vdwg.mxu0
    %935 = vmatprep.subr.bf16.mxu0 %v658
    %936 = vmatpush1.bf16.msra.mxu0 %v657
    %937 = vmatprep.subr.bf16.mxu0 %v660
    %938 = vmatpush1.bf16.msra.mxu0 %v659
    %939 = vmatprep.subr.bf16.mxu0 %v662
    %940 = vmatpush1.bf16.msra.mxu0 %v661
    %941 = vmatprep.subr.bf16.mxu0 %v664
    %942 = vmatpush1.bf16.msra.mxu0 %v663
    %943 = vmatprep.subr.bf16.mxu0 %v666
    %944 = vmatpush1.bf16.msra.mxu0 %v665
    %945 = vmatprep.subr.bf16.mxu0 %v668
    %946 = vmatpush1.bf16.msra.mxu0 %v667
    %947 = vmatprep.subr.bf16.mxu0 %v670
    %948 = vmatpush1.bf16.msra.mxu0 %v669
    %949 = vmatprep.subr.bf16.mxu0 %v672
    %950 = vmatpush1.bf16.msra.mxu0 %v671
    %951 = vmatprep.subr.bf16.mxu0 %v674
    %952 = vmatpush1.bf16.msra.mxu0 %v673
    %953 = vmatprep.subr.bf16.mxu0 %v676
    %954 = vmatpush1.bf16.msra.mxu0 %v675
    %955 = vmatprep.subr.bf16.mxu0 %v678
    %956 = vmatpush1.bf16.msra.mxu0 %v677
    %957 = vmatprep.subr.bf16.mxu0 %v680
    %958 = vmatpush1.bf16.msra.mxu0 %v679
    %959 = vmatprep.subr.bf16.mxu0 %v682
    %960 = vmatpush1.bf16.msra.mxu0 %v681
    %961 = vmatprep.subr.bf16.mxu0 %v684
    %962 = vmatpush1.bf16.msra.mxu0 %v683
    %963 = vmatprep.subr.bf16.mxu0 %v686
    %964 = vmatpush1.bf16.msra.mxu0 %v685
    %965 = vmatprep.subr.bf16.mxu0 %v688
    %966 = vmatpush1.bf16.msra.mxu0 %v687
    %967 = vmatprep.mubr.bf16.mxu0 %v64
    %968 = vmatmul.mubr.bf16.gmra.mrb[0].mxu0 %v63
    %v969 = vpop.f32.mrb[0].mxu0
    %v970 = vadd.f32 %v927, %v969
    %v971 = vpop.f32.mrb[0].mxu0
    %v972 = vadd.f32 %v929, %v971
    %v973 = vpop.f32.mrb[0].mxu0
    %v974 = vadd.f32 %v931, %v973
    %v975 = vpop.f32.mrb[0].mxu0
    %v976 = vadd.f32 %v933, %v975
    %977 = vdwg.mxu0
    %978 = vmatprep.subr.bf16.mxu0 %v690
    %979 = vmatpush1.bf16.msra.mxu0 %v689
    %980 = vmatprep.subr.bf16.mxu0 %v692
    %981 = vmatpush1.bf16.msra.mxu0 %v691
    %982 = vmatprep.subr.bf16.mxu0 %v694
    %983 = vmatpush1.bf16.msra.mxu0 %v693
    %984 = vmatprep.subr.bf16.mxu0 %v696
    %985 = vmatpush1.bf16.msra.mxu0 %v695
    %986 = vmatprep.subr.bf16.mxu0 %v698
    %987 = vmatpush1.bf16.msra.mxu0 %v697
    %988 = vmatprep.subr.bf16.mxu0 %v700
    %989 = vmatpush1.bf16.msra.mxu0 %v699
    %990 = vmatprep.subr.bf16.mxu0 %v702
    %991 = vmatpush1.bf16.msra.mxu0 %v701
    %992 = vmatprep.subr.bf16.mxu0 %v704
    %993 = vmatpush1.bf16.msra.mxu0 %v703
    %994 = vmatprep.subr.bf16.mxu0 %v706
    %995 = vmatpush1.bf16.msra.mxu0 %v705
    %996 = vmatprep.subr.bf16.mxu0 %v708
    %997 = vmatpush1.bf16.msra.mxu0 %v707
    %998 = vmatprep.subr.bf16.mxu0 %v710
    %999 = vmatpush1.bf16.msra.mxu0 %v709
    %1000 = vmatprep.subr.bf16.mxu0 %v712
    %1001 = vmatpush1.bf16.msra.mxu0 %v711
    %1002 = vmatprep.subr.bf16.mxu0 %v714
    %1003 = vmatpush1.bf16.msra.mxu0 %v713
    %1004 = vmatprep.subr.bf16.mxu0 %v716
    %1005 = vmatpush1.bf16.msra.mxu0 %v715
    %1006 = vmatprep.subr.bf16.mxu0 %v718
    %1007 = vmatpush1.bf16.msra.mxu0 %v717
    %1008 = vmatprep.subr.bf16.mxu0 %v720
    %1009 = vmatpush1.bf16.msra.mxu0 %v719
    %1010 = vmatprep.mubr.bf16.mxu0 %v66
    %1011 = vmatmul.mubr.bf16.gmra.mrb[0].mxu0 %v65
    %v1012 = vpop.f32.mrb[0].mxu0
    %v1013 = vadd.f32 %v970, %v1012
    %v1014 = vpop.f32.mrb[0].mxu0
    %v1015 = vadd.f32 %v972, %v1014
    %v1016 = vpop.f32.mrb[0].mxu0
    %v1017 = vadd.f32 %v974, %v1016
    %v1018 = vpop.f32.mrb[0].mxu0
    %v1019 = vadd.f32 %v976, %v1018
    %1020 = vdwg.mxu0
    %v1021 = vmax.f32 %v1013, 0.0
    %v1022 = vmax.f32 %v1015, 0.0
    %v1023 = vmax.f32 %v1017, 0.0
    %v1024 = vmax.f32 %v1019, 0.0
    %v1025 = vpack.c.bf16 %v1023, %v1021
    %v1026 = vpack.c.bf16 %v1024, %v1022
    %v1027 = vld [vmem:[%s3] sm:$0xf]
    %v1028 = vld [vmem:[%s3 + $0x4] sm:$0xf]
    %v1029 = vld [vmem:[%s3 + $0x8] sm:$0xf]
    %v1030 = vld [vmem:[%s3 + $0xc] sm:$0xf]
    %v1031 = vld [vmem:[%s3 + $0x10] sm:$0xf]
    %v1032 = vld [vmem:[%s3 + $0x14] sm:$0xf]
    %v1033 = vld [vmem:[%s3 + $0x18] sm:$0xf]
    %v1034 = vld [vmem:[%s3 + $0x1c] sm:$0xf]
    %v1035 = vld [vmem:[%s3 + $0x20] sm:$0xf]
    %v1036 = vld [vmem:[%s3 + $0x24] sm:$0xf]
    %v1037 = vld [vmem:[%s3 + $0x28] sm:$0xf]
    %v1038 = vld [vmem:[%s3 + $0x2c] sm:$0xf]
    %v1039 = vld [vmem:[%s3 + $0x30] sm:$0xf]
    %v1040 = vld [vmem:[%s3 + $0x34] sm:$0xf]
    %v1041 = vld [vmem:[%s3 + $0x38] sm:$0xf]
    %v1042 = vld [vmem:[%s3 + $0x3c] sm:$0xf]
    %v1043 = vld [vmem:[%s3 + $0x40] sm:$0xf]
    %v1044 = vld [vmem:[%s3 + $0x44] sm:$0xf]
    %v1045 = vld [vmem:[%s3 + $0x48] sm:$0xf]
    %v1046 = vld [vmem:[%s3 + $0x4c] sm:$0xf]
    %v1047 = vld [vmem:[%s3 + $0x50] sm:$0xf]
    %v1048 = vld [vmem:[%s3 + $0x54] sm:$0xf]
    %v1049 = vld [vmem:[%s3 + $0x58] sm:$0xf]
    %v1050 = vld [vmem:[%s3 + $0x5c] sm:$0xf]
    %v1051 = vld [vmem:[%s3 + $0x60] sm:$0xf]
    %v1052 = vld [vmem:[%s3 + $0x64] sm:$0xf]
    %v1053 = vld [vmem:[%s3 + $0x68] sm:$0xf]
    %v1054 = vld [vmem:[%s3 + $0x6c] sm:$0xf]
    %v1055 = vld [vmem:[%s3 + $0x70] sm:$0xf]
    %v1056 = vld [vmem:[%s3 + $0x74] sm:$0xf]
    %v1057 = vld [vmem:[%s3 + $0x78] sm:$0xf]
    %v1058 = vld [vmem:[%s3 + $0x7c] sm:$0xf]
    %v1060 = vlaneseq
    %v1061 = vshrl.u32 %v1060, 7
    %v1062 = vsub.s32 0, %v1061
    %v1063 = vrot.slane %v68, %v1062
    %v1097 = vunpack.c.l.b16 %v1027
    %v1098 = vunpack.c.l.b16 %v1028
    %v1099 = vunpack.c.l.b16 %v1029
    %v1100 = vunpack.c.l.b16 %v1030
    %v1101 = vunpack.c.l.b16 %v1031
    %v1102 = vunpack.c.l.b16 %v1032
    %v1103 = vunpack.c.l.b16 %v1033
    %v1104 = vunpack.c.l.b16 %v1034
    %v1105 = vunpack.c.l.b16 %v1035
    %v1106 = vunpack.c.l.b16 %v1036
    %v1107 = vunpack.c.l.b16 %v1037
    %v1108 = vunpack.c.l.b16 %v1038
    %v1109 = vunpack.c.l.b16 %v1039
    %v1110 = vunpack.c.l.b16 %v1040
    %v1111 = vunpack.c.l.b16 %v1041
    %v1112 = vunpack.c.l.b16 %v1042
    %v1113 = vunpack.c.l.b16 %v1043
    %v1114 = vunpack.c.l.b16 %v1044
    %v1115 = vunpack.c.l.b16 %v1045
    %v1116 = vunpack.c.l.b16 %v1046
    %v1117 = vunpack.c.l.b16 %v1047
    %v1118 = vunpack.c.l.b16 %v1048
    %v1119 = vunpack.c.l.b16 %v1049
    %v1120 = vunpack.c.l.b16 %v1050
    %v1121 = vunpack.c.l.b16 %v1051
    %v1122 = vunpack.c.l.b16 %v1052
    %v1123 = vunpack.c.l.b16 %v1053
    %v1124 = vunpack.c.l.b16 %v1054
    %v1125 = vunpack.c.l.b16 %v1055
    %v1126 = vunpack.c.l.b16 %v1056
    %v1127 = vunpack.c.l.b16 %v1057
    %v1128 = vunpack.c.l.b16 %v1058
    %v1129 = vpack.c.b16 %v1098, %v1097
    %v1130 = vpack.c.b16 %v1100, %v1099
    %v1131 = vpack.c.b16 %v1102, %v1101
    %v1132 = vpack.c.b16 %v1104, %v1103
    %v1133 = vpack.c.b16 %v1106, %v1105
    %v1134 = vpack.c.b16 %v1108, %v1107
    %v1135 = vpack.c.b16 %v1110, %v1109
    %v1136 = vpack.c.b16 %v1112, %v1111
    %v1137 = vpack.c.b16 %v1114, %v1113
    %v1138 = vpack.c.b16 %v1116, %v1115
    %v1139 = vpack.c.b16 %v1118, %v1117
    %v1140 = vpack.c.b16 %v1120, %v1119
    %v1141 = vpack.c.b16 %v1122, %v1121
    %v1142 = vpack.c.b16 %v1124, %v1123
    %v1143 = vpack.c.b16 %v1126, %v1125
    %v1144 = vpack.c.b16 %v1128, %v1127
    %1161 = vmatprep.subr.bf16.mxu0 0
    %1162 = vmatpush1.bf16.msra.mxu0 %v1129
    %1163 = vmatprep.subr.bf16.mxu0 0
    %1164 = vmatpush1.bf16.msra.mxu0 %v1130
    %1165 = vmatprep.subr.bf16.mxu0 0
    %1166 = vmatpush1.bf16.msra.mxu0 %v1131
    %1167 = vmatprep.subr.bf16.mxu0 0
    %1168 = vmatpush1.bf16.msra.mxu0 %v1132
    %1169 = vmatprep.subr.bf16.mxu0 0
    %1170 = vmatpush1.bf16.msra.mxu0 %v1133
    %1171 = vmatprep.subr.bf16.mxu0 0
    %1172 = vmatpush1.bf16.msra.mxu0 %v1134
    %1173 = vmatprep.subr.bf16.mxu0 0
    %1174 = vmatpush1.bf16.msra.mxu0 %v1135
    %1175 = vmatprep.subr.bf16.mxu0 0
    %1176 = vmatpush1.bf16.msra.mxu0 %v1136
    %1177 = vmatprep.subr.bf16.mxu0 0
    %1178 = vmatpush1.bf16.msra.mxu0 %v1137
    %1179 = vmatprep.subr.bf16.mxu0 0
    %1180 = vmatpush1.bf16.msra.mxu0 %v1138
    %1181 = vmatprep.subr.bf16.mxu0 0
    %1182 = vmatpush1.bf16.msra.mxu0 %v1139
    %1183 = vmatprep.subr.bf16.mxu0 0
    %1184 = vmatpush1.bf16.msra.mxu0 %v1140
    %1185 = vmatprep.subr.bf16.mxu0 0
    %1186 = vmatpush1.bf16.msra.mxu0 %v1141
    %1187 = vmatprep.subr.bf16.mxu0 0
    %1188 = vmatpush1.bf16.msra.mxu0 %v1142
    %1189 = vmatprep.subr.bf16.mxu0 0
    %1190 = vmatpush1.bf16.msra.mxu0 %v1143
    %1191 = vmatprep.subr.bf16.mxu0 0
    %1192 = vmatpush1.bf16.msra.mxu0 %v1144
    %1193 = vmatprep.mubr.bf16.mxu0 %v1026
    %1194 = vmatmul.mubr.bf16.gmra.mrb[0].mxu0 %v1025
    %v1195 = vpop.f32.mrb[0].mxu0
    %v1196 = vadd.f32 %v1063, %v1195
    %v1197 = vpop.f32.mrb[0].mxu0
    %v1198 = vpop.f32.mrb[0].mxu0
    %v1199 = vadd.f32 %v1063, %v1198
    %v1200 = vpop.f32.mrb[0].mxu0
    %1201 = vdwg.mxu0
    %v1202 = vmax.f32 %v1196, 0.0
    %v1203 = vmax.f32 %v1199, 0.0
    %v1204 = vpack.c.bf16 %v1203, %v1202
    %v1206 = vunpack.c.l.b16 %v1204
    %v1207 = vunpack.c.h.b16 %v1204
    %v1208 = vpack.c.b16 %v1206, %v1206
    %v1209 = vpack.c.b16 %v1207, %v1207
    %1212 = vst [vmem:[%s8] sm:$0xf] %v1208
    %1213 = vst [vmem:[%s8 + $0x4] sm:$0xf] %v1209
    %v1214 = vld [vmem:[%s5] sm:$0xf]
    %v1215 = vld [vmem:[%s5 + $0x4] sm:$0xf]
    %v1216 = vld [vmem:[%s5 + $0x8] sm:$0xf]
    %v1217 = vld [vmem:[%s5 + $0xc] sm:$0xf]
    %v1218 = vld [vmem:[%s5 + $0x10] sm:$0xf]
    %v1219 = vld [vmem:[%s5 + $0x14] sm:$0xf]
    %v1220 = vld [vmem:[%s5 + $0x18] sm:$0xf]
    %v1221 = vld [vmem:[%s5 + $0x1c] sm:$0xf]
    %v1222 = vld [vmem:[%s5 + $0x20] sm:$0xf]
    %v1223 = vld [vmem:[%s5 + $0x24] sm:$0xf]
    %v1224 = vld [vmem:[%s5 + $0x28] sm:$0xf]
    %v1225 = vld [vmem:[%s5 + $0x2c] sm:$0xf]
    %v1226 = vld [vmem:[%s5 + $0x30] sm:$0xf]
    %v1227 = vld [vmem:[%s5 + $0x34] sm:$0xf]
    %v1228 = vld [vmem:[%s5 + $0x38] sm:$0xf]
    %v1229 = vld [vmem:[%s5 + $0x3c] sm:$0xf]
    %v1231 = vlaneseq
    %v1232 = vshrl.u32 %v1231, 7
    %v1233 = vsub.s32 0, %v1232
    %v1234 = vrot.slane %v69, %v1233
    %v1252 = vunpack.c.l.b16 %v1214
    %v1253 = vunpack.c.l.b16 %v1215
    %v1254 = vunpack.c.l.b16 %v1216
    %v1255 = vunpack.c.l.b16 %v1217
    %v1256 = vunpack.c.l.b16 %v1218
    %v1257 = vunpack.c.l.b16 %v1219
    %v1258 = vunpack.c.l.b16 %v1220
    %v1259 = vunpack.c.l.b16 %v1221
    %v1260 = vunpack.c.l.b16 %v1222
    %v1261 = vunpack.c.l.b16 %v1223
    %v1262 = vunpack.c.l.b16 %v1224
    %v1263 = vunpack.c.l.b16 %v1225
    %v1264 = vunpack.c.l.b16 %v1226
    %v1265 = vunpack.c.l.b16 %v1227
    %v1266 = vunpack.c.l.b16 %v1228
    %v1267 = vunpack.c.l.b16 %v1229
    %v1268 = vpack.c.b16 %v1253, %v1252
    %v1269 = vpack.c.b16 %v1255, %v1254
    %v1270 = vpack.c.b16 %v1257, %v1256
    %v1271 = vpack.c.b16 %v1259, %v1258
    %v1272 = vpack.c.b16 %v1261, %v1260
    %v1273 = vpack.c.b16 %v1263, %v1262
    %v1274 = vpack.c.b16 %v1265, %v1264
    %v1275 = vpack.c.b16 %v1267, %v1266
    %1284 = vmatprep.subr.bf16.mxu0 0
    %1285 = vmatpush1.bf16.msra.mxu0 %v1268
    %1286 = vmatprep.subr.bf16.mxu0 0
    %1287 = vmatpush1.bf16.msra.mxu0 %v1269
    %1288 = vmatprep.subr.bf16.mxu0 0
    %1289 = vmatpush1.bf16.msra.mxu0 %v1270
    %1290 = vmatprep.subr.bf16.mxu0 0
    %1291 = vmatpush1.bf16.msra.mxu0 %v1271
    %1292 = vmatprep.subr.bf16.mxu0 0
    %1293 = vmatpush1.bf16.msra.mxu0 %v1272
    %1294 = vmatprep.subr.bf16.mxu0 0
    %1295 = vmatpush1.bf16.msra.mxu0 %v1273
    %1296 = vmatprep.subr.bf16.mxu0 0
    %1297 = vmatpush1.bf16.msra.mxu0 %v1274
    %1298 = vmatprep.subr.bf16.mxu0 0
    %1299 = vmatpush1.bf16.msra.mxu0 %v1275
    %1300 = vmatprep.subr.bf16.mxu0 0
    %1301 = vmatpush1.bf16.msra.mxu0 0
    %1302 = vmatprep.subr.bf16.mxu0 0
    %1303 = vmatpush1.bf16.msra.mxu0 0
    %1304 = vmatprep.subr.bf16.mxu0 0
    %1305 = vmatpush1.bf16.msra.mxu0 0
    %1306 = vmatprep.subr.bf16.mxu0 0
    %1307 = vmatpush1.bf16.msra.mxu0 0
    %1308 = vmatprep.subr.bf16.mxu0 0
    %1309 = vmatpush1.bf16.msra.mxu0 0
    %1310 = vmatprep.subr.bf16.mxu0 0
    %1311 = vmatpush1.bf16.msra.mxu0 0
    %1312 = vmatprep.subr.bf16.mxu0 0
    %1313 = vmatpush1.bf16.msra.mxu0 0
    %1314 = vmatprep.subr.bf16.mxu0 0
    %1315 = vmatpush1.bf16.msra.mxu0 0
    %1316 = vmatprep.mubr.bf16.mxu0 0
    %1317 = vmatmul.mubr.bf16.gmra.mrb[0].mxu0 %v1204
    %v1318 = vpop.f32.mrb[0].mxu0
    %v1319 = vadd.f32 %v1234, %v1318
    %v1320 = vpop.f32.mrb[0].mxu0
    %v1321 = vpop.f32.mrb[0].mxu0
    %v1322 = vadd.f32 %v1234, %v1321
    %v1323 = vpop.f32.mrb[0].mxu0
    %1324 = vdwg.mxu0
    %1325 = vst [vmem:[%s7] sm:$0xff] %v1319
    %1326 = vst [vmem:[%s7 + $0x8] sm:$0xff] %v1322
    // Predicated region
    $region34: #{finetune_forward.1} parent=1 // pred_check
      _
    $region35: #{finetune_forward.1} parent=1 // pred_check_branch
      %1328 = sbr.rel (0) target = $region37
    $region36: #{finetune_forward.1} parent=1 // pred_region
      _
    $region37: #{finetune_forward.1} parent=1 // pred_fallthru
      _
    // Predicated region
    $region38: #{finetune_forward.1} parent=1 // pred_check
      _
    $region39: #{finetune_forward.1} parent=1 // pred_check_branch
      %1330 = sbr.rel (0) target = $region41
    $region40: #{finetune_forward.1} parent=1 // pred_region
      _
    $region41: #{finetune_forward.1} parent=1 // pred_fallthru
      _
    // Predicated region
    $region42: #{finetune_forward.1} parent=1 // pred_check
      _
    $region43: #{finetune_forward.1} parent=1 // pred_check_branch
      %1332 = sbr.rel (0) target = $region45
    $region44: #{finetune_forward.1} parent=1 // pred_region
      _
    $region45: #{finetune_forward.1} parent=1 // pred_fallthru
      _
    // Predicated region
    $region46: #{finetune_forward.1} parent=1 // pred_check
      _
    $region47: #{finetune_forward.1} parent=1 // pred_check_branch
      %1334 = sbr.rel (0) target = $region49
    $region48: #{finetune_forward.1} parent=1 // pred_region
      _
    $region49: #{finetune_forward.1} parent=1 // pred_fallthru
      _
    %1335 = vsyncpa [#allocation3], 1

</llo_original>
